<compile_context>
chip_gen: v5e
topology: v5e:2x2
jax: 0.10.0
libtpu: 0.0.40
codegen_flags: <defaults>
</compile_context>

<pallas_src>
import jax
import jax.numpy as jnp
from jax import lax
from jax.experimental import pallas as pl
from jax.experimental.pallas import tpu as pltpu

NUM_CLASSES = 19
BG_ID = 0                        # bg_small = bg_medium = bg_big = 0
HEAD_PAD = 24                    # per-head logit rows padded 19 -> 24 (8-aligned)
N_HEADS = 3
HIDDENS = (16, 32, 64)           # small / medium / big hidden widths
HID_TOTAL = sum(HIDDENS)         # 112
LOGIT_ROWS = N_HEADS * HEAD_PAD  # 72
NEG_INF = -1e30
TILE_N_MAX = 8192                # pixels per grid step (lane axis), multiple of 128


def _round_up(v, m):
    return (v + m - 1) // m * m


def _pick_tile(hw, batch):
    """Pick the pixel-tile (lane) size.

    Prefers a tile that divides the 128-rounded pixel count (no extra jnp.pad
    HBM pass); keeps >=2 grid steps when possible (v7x has 2 TensorCores)."""
    hw_128 = _round_up(hw, 128)
    tile = min(TILE_N_MAX, hw_128)
    if hw_128 % tile != 0:
        t = tile
        while t > 2048 and hw_128 % t != 0:
            t -= 128
        if hw_128 % t == 0:
            tile = t
    if batch * pl.cdiv(hw_128, tile) < 2 and tile >= 256:
        tile = max(128, (tile // 2) // 128 * 128)
    return tile


def _ensemble_kernel(x_ref, w1_ref, b1_ref, w2_ref, b2_ref, out_ref):
    # x_ref: [1, 3, T] f32, channel-major (pixels on the lane axis).
    x = x_ref[0]                                   # [3, T] f32
    w1 = w1_ref[...]                               # [112, 3] f32
    b1 = b1_ref[...]                               # [112, 1] f32

    # Layer 1 on the VPU (K=3 wastes MXU row-pushes): lane-broadcast w1
    # columns x sublane-broadcast x rows, bias folded in as the acc init.
    h = b1 + w1[:, 0:1] * x[0:1, :]
    h = h + w1[:, 1:2] * x[1:2, :]
    h = h + w1[:, 2:3] * x[2:3, :]
    h = jnp.maximum(h, 0.0).astype(jnp.bfloat16)   # [112, T] bf16 for the MXU

    # Layer 2 on the MXU in bf16, f32 accumulate.  Bias add stays f32 so the
    # -1e30 pad rows never win the argmax.
    logits = jnp.dot(w2_ref[...], h, preferred_element_type=jnp.float32)
    logits = logits + b2_ref[...]                  # [72, T] f32

    # First-occurrence argmax over the class sublanes; iota hoisted and shared
    # by all three heads (JAX does not CSE broadcasted iotas).
    t = logits.shape[1]
    idx = lax.broadcasted_iota(jnp.int32, (HEAD_PAD, t), 0)

    def head_argmax(l):                            # l: [HEAD_PAD, T] f32
        m = jnp.max(l, axis=0, keepdims=True)
        cand = jnp.where(l == m, idx, HEAD_PAD)
        return jnp.min(cand, axis=0, keepdims=True)   # [1, T] int32

    pred_small = head_argmax(logits[0 * HEAD_PAD:1 * HEAD_PAD])
    pred_medium = head_argmax(logits[1 * HEAD_PAD:2 * HEAD_PAD])
    pred_big = head_argmax(logits[2 * HEAD_PAD:3 * HEAD_PAD])

    # compose_predictions(pred_small, pred_medium, pred_big, bg=0):
    composed = jnp.where(pred_medium != BG_ID, pred_medium, pred_big)
    composed = jnp.where(pred_small != BG_ID, pred_small, composed)  # [1, T] i32

    # Lane-dense writeback: fold [1, T] lanes into [t_rows, 128] rows, one
    # 8-row vreg group at a time -> unmasked [8, 128] stores.
    t_rows = out_ref.shape[1]
    for g in range(0, t_rows, 8):
        rows = min(8, t_rows - g)
        chunk = jnp.concatenate(
            [composed[:, (g + r) * 128:(g + r + 1) * 128] for r in range(rows)],
            axis=0)
        out_ref[0, g:g + rows, :] = chunk


def fuse_params(params):
    """Fuse the three per-pixel MLP heads into channel-major block matrices.

    Returns:
      w1: [112, 3]  f32  rows = [small 16 | medium 32 | big 64] (pre-transposed)
      b1: [112, 1]  f32
      w2: [72, 112] bf16 block-diagonal, 24 rows per head (19 real + 5 pad)
      b2: [72, 1]   f32  pad rows get -1e30 so they never win the argmax
    """
    w1_rows, b1_rows = [], []
    w2 = jnp.zeros((LOGIT_ROWS, HID_TOTAL), jnp.float32)
    b2 = jnp.full((LOGIT_ROWS, 1), NEG_INF, jnp.float32)
    col = 0
    for i, name in enumerate(("small", "medium", "big")):
        w1_i, b1_i, w2_i, b2_i = params[name]
        hdim = w1_i.shape[1]
        w1_rows.append(w1_i.T)
        b1_rows.append(b1_i.reshape(hdim, 1))
        r0 = i * HEAD_PAD
        w2 = w2.at[r0:r0 + NUM_CLASSES, col:col + hdim].set(w2_i.T)
        b2 = b2.at[r0:r0 + NUM_CLASSES, :].set(b2_i.reshape(NUM_CLASSES, 1))
        col += hdim
    return (jnp.concatenate(w1_rows, axis=0).astype(jnp.float32),
            jnp.concatenate(b1_rows, axis=0).astype(jnp.float32),
            w2.astype(jnp.bfloat16),       # MXU operand
            b2)                            # bias (incl. -1e30 pads) stays f32


@jax.jit
def ensemble_forward(x_nchw, params):
    """x_nchw: [B, 3, H, W] f32 -> [B, H, W] int32 training IDs."""
    B, C, H, W = x_nchw.shape
    hw = H * W
    x = x_nchw.reshape(B, C, hw)          # native channel-major view, no transpose

    tile_n = _pick_tile(hw, B)
    hw_pad = _round_up(hw, tile_n)
    if hw_pad != hw:                      # pad pixel axis; padded pixels sliced off
        x = jnp.pad(x, ((0, 0), (0, 0), (0, hw_pad - hw)))
    t_rows = tile_n // 128

    w1, b1, w2, b2 = fuse_params(params)

    # VMEM budget: ~5 live [HID_TOTAL, T] f32 temporaries (layer-1 broadcasts)
    # dominate; logits / argmax temps and pipelined I/O blocks are smaller.
    est = tile_n * (5 * HID_TOTAL * 4 + 3 * LOGIT_ROWS * 4 + 3 * HEAD_PAD * 4
                    + 2 * 8 * 4 + 2 * 4) + (4 << 20)
    vmem_limit = int(min(48 << 20, max(32 << 20, est)))   # <= v7x 64 MiB physical

    out = pl.pallas_call(
        _ensemble_kernel,
        out_shape=jax.ShapeDtypeStruct((B, hw_pad // 128, 128), jnp.int32),
        grid_spec=pltpu.PrefetchScalarGridSpec(
            num_scalar_prefetch=0,
            grid=(B, hw_pad // tile_n),
            in_specs=[
                pl.BlockSpec((1, C, tile_n), lambda b, i: (b, 0, i)),
                pl.BlockSpec((HID_TOTAL, C), lambda b, i: (0, 0)),
                pl.BlockSpec((HID_TOTAL, 1), lambda b, i: (0, 0)),
                pl.BlockSpec((LOGIT_ROWS, HID_TOTAL), lambda b, i: (0, 0)),
                pl.BlockSpec((LOGIT_ROWS, 1), lambda b, i: (0, 0)),
            ],
            out_specs=pl.BlockSpec((1, t_rows, 128), lambda b, i: (b, i, 0)),
        ),
        compiler_params=pltpu.CompilerParams(
            dimension_semantics=("parallel", "parallel"),
            vmem_limit_bytes=vmem_limit),
    )(x, w1, b1, w2, b2)

    return out.reshape(B, hw_pad)[:, :hw].reshape(B, H, W)


def make_params(key):
    """Deterministic per-pixel MLP heads: 3 -> hidden -> NUM_CLASSES."""
    params = {}
    for name, hdim in zip(("small", "medium", "big"), HIDDENS):
        key, k1, k2, k3, k4 = jax.random.split(key, 5)
        params[name] = (
            jax.random.normal(k1, (3, hdim), jnp.float32) * 0.5,
            jax.random.normal(k2, (hdim,), jnp.float32) * 0.1,
            jax.random.normal(k3, (hdim, NUM_CLASSES), jnp.float32) * 0.5,
            jax.random.normal(k4, (NUM_CLASSES,), jnp.float32) * 0.1,
        )
    return params


def make_quantized_params():
    """Params whose values keep every intermediate exactly representable in
    both f32 and bf16 (weights are small multiples of powers of two), so the
    kernel's bf16 layer-2 path and the reference must agree bit-exactly."""
    params = {}
    for i, (name, hdim) in enumerate(zip(("small", "medium", "big"), HIDDENS)):
        k1, k2 = jax.random.split(jax.random.PRNGKey(100 + i))
        w1 = jnp.round(jax.random.uniform(k1, (3, hdim), minval=-8., maxval=8.)) * 0.25
        b1 = jnp.full((hdim,), 4.0, jnp.float32)
        w2 = jnp.round(jax.random.uniform(k2, (hdim, NUM_CLASSES),
                                          minval=-8., maxval=8.)) * 0.5
        b2 = jnp.arange(NUM_CLASSES, dtype=jnp.float32) * 0.125
        params[name] = (w1.astype(jnp.float32), b1, w2.astype(jnp.float32), b2)
    return params


def ensemble_reference(x_nchw, params):
    """Pure-JAX per-head reference of the same forward pass at the kernel's
    numerics: f32 layer 1, bf16 MXU operands / f32 accumulate for layer 2."""
    B, C, H, W = x_nchw.shape
    x = jnp.transpose(x_nchw, (0, 2, 3, 1)).reshape(B * H * W, C)

    def head(p):
        w1, b1, w2, b2 = p
        h = jnp.maximum(
            jnp.dot(x, w1, precision=lax.Precision.HIGHEST) + b1, 0.0)
        logits = jnp.dot(h.astype(jnp.bfloat16), w2.astype(jnp.bfloat16),
                         preferred_element_type=jnp.float32) + b2
        return jnp.argmax(logits, axis=-1).astype(jnp.int32)

    ps, pm, pb = (head(params[n]) for n in ("small", "medium", "big"))
    composed = jnp.where(pm != BG_ID, pm, pb)
    composed = jnp.where(ps != BG_ID, ps, composed)
    return composed.reshape(B, H, W)


if __name__ == "__main__":
    key = jax.random.PRNGKey(0)
    k_x, k_p, k_q = jax.random.split(key, 3)

    # Test 1: random params / inputs.  Kernel and reference share the same
    # bf16 layer-2 quantization, so only MXU-vs-XLA f32 accumulation order
    # differs (~1e-7 relative) -> near-exact agreement expected.
    B, H, W = 2, 16, 16
    x = jax.random.normal(k_x, (B, 3, H, W), jnp.float32)
    params = make_params(k_p)

    seg = jax.block_until_ready(ensemble_forward(x, params))
    ref = jax.block_until_ready(ensemble_reference(x, params))
    assert seg.shape == (B, H, W) and seg.dtype == jnp.int32
    assert bool(jnp.all((seg >= 0) & (seg < NUM_CLASSES)))
    agree = float(jnp.mean((seg == ref).astype(jnp.float32)))
    assert agree >= 0.995, f"Pallas kernel agreement vs reference too low: {agree:.4f}"

    # Test 2: tie-free quantized params on a ragged (padded) shape with B=1 —
    # every intermediate is exact in f32 and bf16, so require exact equality.
    Bq, Hq, Wq = 1, 20, 24
    xq = jnp.round(jax.random.uniform(k_q, (Bq, 3, Hq, Wq),
                                      minval=-4., maxval=4.)) * 0.5
    qparams = make_quantized_params()
    seg_q = jax.block_until_ready(ensemble_forward(xq, qparams))
    ref_q = jax.block_until_ready(ensemble_reference(xq, qparams))
    assert seg_q.shape == (Bq, Hq, Wq) and seg_q.dtype == jnp.int32
    assert bool(jnp.all(seg_q == ref_q)), "exact-match check failed"

    print("KERNEL_OK")
</pallas_src>

<mosaic_0001>
module attributes {stable_mosaic.version = 11 : i64} {
  func.func @_ensemble_kernel(%arg0: i32, %arg1: i32, %arg2: memref<1x3x256xf32, #tpu.memory_space<vmem>>, %arg3: memref<112x3xf32, #tpu.memory_space<vmem>>, %arg4: memref<112x1xf32, #tpu.memory_space<vmem>>, %arg5: memref<72x112xbf16, #tpu.memory_space<vmem>>, %arg6: memref<72x1xf32, #tpu.memory_space<vmem>>, %arg7: memref<1x2x128xi32, #tpu.memory_space<vmem>>) attributes {dimension_semantics = [#tpu.dimension_semantics<parallel>, #tpu.dimension_semantics<parallel>], iteration_bounds = array<i64: 2, 1>, scalar_prefetch = 0 : i64, scratch_operands = 0 : i64, tpu.core_type = #tpu.core_type<tc>, window_params = [{transform_indices = @transform_0, window_bounds = array<i64: 1, 3, 256>}, {pipeline_mode = #tpu.pipeline_mode<synchronous>, transform_indices = @transform_1, window_bounds = array<i64: 112, 3>}, {pipeline_mode = #tpu.pipeline_mode<synchronous>, transform_indices = @transform_2, window_bounds = array<i64: 112, 1>}, {pipeline_mode = #tpu.pipeline_mode<synchronous>, transform_indices = @transform_3, window_bounds = array<i64: 72, 112>}, {pipeline_mode = #tpu.pipeline_mode<synchronous>, transform_indices = @transform_4, window_bounds = array<i64: 72, 1>}, {transform_indices = @transform_5, window_bounds = array<i64: 1, 2, 128>}]} {
    %c0 = arith.constant 0 : index
    %c0_0 = arith.constant 0 : index
    %c0_1 = arith.constant 0 : index
    %0 = vector.load %arg2[%c0, %c0_0, %c0_1] : memref<1x3x256xf32, #tpu.memory_space<vmem>>, vector<1x3x256xf32>
    %1 = vector.shape_cast %0 : vector<1x3x256xf32> to vector<3x256xf32>
    %c0_2 = arith.constant 0 : index
    %c0_3 = arith.constant 0 : index
    %2 = vector.load %arg3[%c0_2, %c0_3] : memref<112x3xf32, #tpu.memory_space<vmem>>, vector<112x3xf32>
    %c0_4 = arith.constant 0 : index
    %c0_5 = arith.constant 0 : index
    %3 = vector.load %arg4[%c0_4, %c0_5] : memref<112x1xf32, #tpu.memory_space<vmem>>, vector<112x1xf32>
    %4 = vector.extract_strided_slice %2 {offsets = [0, 0], sizes = [112, 1], strides = [1, 1]} : vector<112x3xf32> to vector<112x1xf32>
    %5 = vector.extract_strided_slice %1 {offsets = [0, 0], sizes = [1, 256], strides = [1, 1]} : vector<3x256xf32> to vector<1x256xf32>
    %6 = vector.broadcast %4 : vector<112x1xf32> to vector<112x256xf32>
    %7 = vector.broadcast %5 : vector<1x256xf32> to vector<112x256xf32>
    %8 = arith.mulf %6, %7 : vector<112x256xf32>
    %9 = vector.broadcast %3 : vector<112x1xf32> to vector<112x256xf32>
    %10 = arith.addf %9, %8 : vector<112x256xf32>
    %11 = vector.extract_strided_slice %2 {offsets = [0, 1], sizes = [112, 1], strides = [1, 1]} : vector<112x3xf32> to vector<112x1xf32>
    %12 = vector.extract_strided_slice %1 {offsets = [1, 0], sizes = [1, 256], strides = [1, 1]} : vector<3x256xf32> to vector<1x256xf32>
    %13 = vector.broadcast %11 : vector<112x1xf32> to vector<112x256xf32>
    %14 = vector.broadcast %12 : vector<1x256xf32> to vector<112x256xf32>
    %15 = arith.mulf %13, %14 : vector<112x256xf32>
    %16 = arith.addf %10, %15 : vector<112x256xf32>
    %17 = vector.extract_strided_slice %2 {offsets = [0, 2], sizes = [112, 1], strides = [1, 1]} : vector<112x3xf32> to vector<112x1xf32>
    %18 = vector.extract_strided_slice %1 {offsets = [2, 0], sizes = [1, 256], strides = [1, 1]} : vector<3x256xf32> to vector<1x256xf32>
    %19 = vector.broadcast %17 : vector<112x1xf32> to vector<112x256xf32>
    %20 = vector.broadcast %18 : vector<1x256xf32> to vector<112x256xf32>
    %21 = arith.mulf %19, %20 : vector<112x256xf32>
    %22 = arith.addf %16, %21 : vector<112x256xf32>
    %cst = arith.constant 0.000000e+00 : f32
    %23 = vector.broadcast %cst : f32 to vector<112x256xf32>
    %24 = arith.maximumf %22, %23 : vector<112x256xf32>
    %25 = arith.truncf %24 : vector<112x256xf32> to vector<112x256xbf16>
    %c0_6 = arith.constant 0 : index
    %c0_7 = arith.constant 0 : index
    %26 = vector.load %arg5[%c0_6, %c0_7] : memref<72x112xbf16, #tpu.memory_space<vmem>>, vector<72x112xbf16>
    %cst_8 = arith.constant dense<0.000000e+00> : vector<72x256xf32>
    %27 = tpu.matmul %26, %25, %cst_8 {dimension_numbers = #tpu.dot_dimension_numbers<[1], [0], [0], [1], [0, 0, 1, 1], [], []>} : vector<72x112xbf16>, vector<112x256xbf16>, vector<72x256xf32> -> vector<72x256xf32>
    %c0_9 = arith.constant 0 : index
    %c0_10 = arith.constant 0 : index
    %28 = vector.load %arg6[%c0_9, %c0_10] : memref<72x1xf32, #tpu.memory_space<vmem>>, vector<72x1xf32>
    %29 = vector.broadcast %28 : vector<72x1xf32> to vector<72x256xf32>
    %30 = arith.addf %27, %29 : vector<72x256xf32>
    %31 = tpu.iota {dimensions = array<i32: 0>} : vector<24x256xi32>
    %32 = vector.extract_strided_slice %30 {offsets = [0, 0], sizes = [24, 256], strides = [1, 1]} : vector<72x256xf32> to vector<24x256xf32>
    %cst_11 = arith.constant dense<0xFF800000> : vector<256xf32>
    %33 = vector.multi_reduction <maximumf>, %32, %cst_11 [0] : vector<24x256xf32> to vector<256xf32>
    %34 = vector.shape_cast %33 : vector<256xf32> to vector<1x256xf32>
    %35 = vector.broadcast %34 : vector<1x256xf32> to vector<24x256xf32>
    %36 = arith.cmpf oeq, %32, %35 : vector<24x256xf32>
    %c24_i32 = arith.constant 24 : i32
    %37 = vector.broadcast %c24_i32 : i32 to vector<24x256xi32>
    %38 = arith.select %36, %31, %37 : vector<24x256xi1>, vector<24x256xi32>
    %cst_12 = arith.constant dense<2147483647> : vector<256xi32>
    %39 = vector.multi_reduction <minsi>, %38, %cst_12 [0] : vector<24x256xi32> to vector<256xi32>
    %40 = vector.shape_cast %39 : vector<256xi32> to vector<1x256xi32>
    %41 = vector.extract_strided_slice %30 {offsets = [24, 0], sizes = [24, 256], strides = [1, 1]} : vector<72x256xf32> to vector<24x256xf32>
    %cst_13 = arith.constant dense<0xFF800000> : vector<256xf32>
    %42 = vector.multi_reduction <maximumf>, %41, %cst_13 [0] : vector<24x256xf32> to vector<256xf32>
    %43 = vector.shape_cast %42 : vector<256xf32> to vector<1x256xf32>
    %44 = vector.broadcast %43 : vector<1x256xf32> to vector<24x256xf32>
    %45 = arith.cmpf oeq, %41, %44 : vector<24x256xf32>
    %c24_i32_14 = arith.constant 24 : i32
    %46 = vector.broadcast %c24_i32_14 : i32 to vector<24x256xi32>
    %47 = arith.select %45, %31, %46 : vector<24x256xi1>, vector<24x256xi32>
    %cst_15 = arith.constant dense<2147483647> : vector<256xi32>
    %48 = vector.multi_reduction <minsi>, %47, %cst_15 [0] : vector<24x256xi32> to vector<256xi32>
    %49 = vector.shape_cast %48 : vector<256xi32> to vector<1x256xi32>
    %50 = vector.extract_strided_slice %30 {offsets = [48, 0], sizes = [24, 256], strides = [1, 1]} : vector<72x256xf32> to vector<24x256xf32>
    %cst_16 = arith.constant dense<0xFF800000> : vector<256xf32>
    %51 = vector.multi_reduction <maximumf>, %50, %cst_16 [0] : vector<24x256xf32> to vector<256xf32>
    %52 = vector.shape_cast %51 : vector<256xf32> to vector<1x256xf32>
    %53 = vector.broadcast %52 : vector<1x256xf32> to vector<24x256xf32>
    %54 = arith.cmpf oeq, %50, %53 : vector<24x256xf32>
    %c24_i32_17 = arith.constant 24 : i32
    %55 = vector.broadcast %c24_i32_17 : i32 to vector<24x256xi32>
    %56 = arith.select %54, %31, %55 : vector<24x256xi1>, vector<24x256xi32>
    %cst_18 = arith.constant dense<2147483647> : vector<256xi32>
    %57 = vector.multi_reduction <minsi>, %56, %cst_18 [0] : vector<24x256xi32> to vector<256xi32>
    %58 = vector.shape_cast %57 : vector<256xi32> to vector<1x256xi32>
    %c0_i32 = arith.constant 0 : i32
    %59 = vector.broadcast %c0_i32 : i32 to vector<1x256xi32>
    %60 = arith.cmpi ne, %49, %59 : vector<1x256xi32>
    %61 = arith.select %60, %49, %58 : vector<1x256xi1>, vector<1x256xi32>
    %c0_i32_19 = arith.constant 0 : i32
    %62 = vector.broadcast %c0_i32_19 : i32 to vector<1x256xi32>
    %63 = arith.cmpi ne, %40, %62 : vector<1x256xi32>
    %64 = arith.select %63, %40, %61 : vector<1x256xi1>, vector<1x256xi32>
    %65 = vector.extract_strided_slice %64 {offsets = [0, 0], sizes = [1, 128], strides = [1, 1]} : vector<1x256xi32> to vector<1x128xi32>
    %66 = vector.extract_strided_slice %64 {offsets = [0, 128], sizes = [1, 128], strides = [1, 1]} : vector<1x256xi32> to vector<1x128xi32>
    %67 = tpu.concatenate %65, %66 in 0 : vector<1x128xi32>, vector<1x128xi32> -> vector<2x128xi32>
    %c0_20 = arith.constant 0 : index
    %c0_21 = arith.constant 0 : index
    %c0_22 = arith.constant 0 : index
    %68 = vector.load %arg7[%c0_20, %c0_21, %c0_22] : memref<1x2x128xi32, #tpu.memory_space<vmem>>, vector<1x2x128xi32>
    %69 = vector.shape_cast %68 : vector<1x2x128xi32> to vector<2x128xi32>
    %70 = vector.shape_cast %67 : vector<2x128xi32> to vector<1x2x128xi32>
    tpu.vector_store %arg7[%c0_20, %c0_21, %c0_22], %70 {strides = array<i32>} : memref<1x2x128xi32, #tpu.memory_space<vmem>>, vector<1x2x128xi32>,
    return
  }
  func.func @transform_0(%arg0: i32, %arg1: i32) -> (i32, i32, i32) {
    %c0_i32 = arith.constant 0 : i32
    %c0_i32_0 = arith.constant 0 : i32
    return %arg0, %c0_i32, %arg1 : i32, i32, i32
  }
  func.func @transform_1(%arg0: i32, %arg1: i32) -> (i32, i32) {
    %c0_i32 = arith.constant 0 : i32
    %c0_i32_0 = arith.constant 0 : i32
    %c0_i32_1 = arith.constant 0 : i32
    return %c0_i32, %c0_i32_0 : i32, i32
  }
  func.func @transform_2(%arg0: i32, %arg1: i32) -> (i32, i32) {
    %c0_i32 = arith.constant 0 : i32
    %c0_i32_0 = arith.constant 0 : i32
    %c0_i32_1 = arith.constant 0 : i32
    return %c0_i32, %c0_i32_0 : i32, i32
  }
  func.func @transform_3(%arg0: i32, %arg1: i32) -> (i32, i32) {
    %c0_i32 = arith.constant 0 : i32
    %c0_i32_0 = arith.constant 0 : i32
    %c0_i32_1 = arith.constant 0 : i32
    return %c0_i32, %c0_i32_0 : i32, i32
  }
  func.func @transform_4(%arg0: i32, %arg1: i32) -> (i32, i32) {
    %c0_i32 = arith.constant 0 : i32
    %c0_i32_0 = arith.constant 0 : i32
    %c0_i32_1 = arith.constant 0 : i32
    return %c0_i32, %c0_i32_0 : i32, i32
  }
  func.func @transform_5(%arg0: i32, %arg1: i32) -> (i32, i32, i32) {
    %c0_i32 = arith.constant 0 : i32
    %c0_i32_0 = arith.constant 0 : i32
    return %arg0, %arg1, %c0_i32 : i32, i32, i32
  }
}

</mosaic_0001>

<llo_original>
// kernel: ensemble_forward.1
$region0: #{ensemble_forward.1}
  #allocation0 [shape = 'u32[]', space=smem, size = 0x4, offset = 0x4, fixed_abs, tag = 'smem constant byte address 0x4 - core index']
  #allocation1 [shape = 'u32[72,128]{1,0:T(1,128)}', space=vmem, size = 0x9000, scoped, tag = 'internal scratch']
  %s0 = inlined_call_operand.vmem [shape: f32[2,3,256], index: 0, kind: input, shape index: {}]
  %s1 = inlined_call_operand.vmem [shape: f32[112,3], index: 1, kind: input, shape index: {}]
  %s2 = inlined_call_operand.vmem [shape: f32[112,1], index: 2, kind: input, shape index: {}]
  %s3 = inlined_call_operand.vmem [shape: bf16[72,112], index: 3, kind: input, shape index: {}]
  %s4 = inlined_call_operand.vmem [shape: f32[72,1], index: 4, kind: input, shape index: {}]
  %s5 = inlined_call_operand.vmem [shape: s32[2,2,128], index: 5, kind: output, shape index: {}]
  %s6 = sld [smem:[#allocation0]]
  $region53: #{ensemble_forward.1} parent=0
    _
  %s8 = ssub.s32 1, %s6
  %s9 = scalar_select 0, %s8, %s6
  loop: start=0, step=1, limit=4
  $region2: #{ensemble_forward.1} parent=0 // loop_pre_header
    _
  $region3: #{ensemble_forward.1} parent=0 // loop_header
    %s11 = sphi 0, %s15
    %p12 = scmp.ge.s32.totalorder %s11, 4
    %s18 = sphi 0, %s30
    %s19 = sphi 0, %s26
    %s20 = sphi 0, %s18
    %s21 = sphi 0, %s19
    %s22 = sphi 0, %s20
    %s23 = sphi 0, %s21
    %s35 = sphi 0, %s37
    %s38 = sphi 0, %s35
    %s39 = sphi 0, %s38
    %s55 = sphi 0, %s39
    %s59 = sphi 0, %s59
    %s61 = sphi 0, %s59
    %s62 = sphi 0, %s61
    %s76 = sphi 0, %s62
    %s80 = sphi 0, %s80
    %s82 = sphi 0, %s80
    %s83 = sphi 0, %s82
    %s97 = sphi 0, %s83
    %s101 = sphi 0, %s101
    %s103 = sphi 0, %s101
    %s104 = sphi 0, %s103
    %s118 = sphi 0, %s104
    %s122 = sphi 0, %s122
    %s124 = sphi 0, %s122
    %s125 = sphi 0, %s124
    %s139 = sphi 0, %s125
    %s147 = sphi 0, %s149
    %s150 = sphi 0, %s147
    %s151 = sphi 0, %s150
    %s167 = sphi 0, %s151
  $region4: #{ensemble_forward.1} parent=0 // loop_header_branch
    %14 = sbr.rel (%p12) target = $region8
  $region5: #{ensemble_forward.1} parent=0 // loop_body
    %s16 = ssub.s32 %s11, 1
    %s17 = ssub.s32 %s11, 2
    %s24 = sadd.s32 1, %s19
    %p25 = scmp.ge.s32.totalorder %s24, 1
    %s26 = scalar_select %p25, 0, %s24
    %s27 = sadd.s32 1, %s18
    %s28 = scalar_select %p25, %s27, %s18
    %p29 = scmp.ge.s32.totalorder %s28, 2
    %s30 = scalar_select %p29, 0, %s28
    %s31 = ssub.s32 %s18, %s30
    %s32 = ssub.s32 %s19, %s26
    %s33 = sor.u32 %s31, %s32
    %p34 = scmp.eq.s32.totalorder %s33, 0
    %s36 = sadd.s32 %s35, 1
    %s37 = scalar_select %p34, %s35, %s36
    %p40 = pneg %p34
    %p41 = scmp.eq.s32.totalorder %s11, 1
    %p42 = por %p40, %p41
    %p43 = scmp.ne.s32.totalorder %s35, %s38
    %p44 = scmp.eq.s32.totalorder %s11, 0
    %p45 = por %p43, %p44
    %p46 = scmp.ne.s32.totalorder %s35, %s38
    %p47 = scmp.eq.s32.totalorder %s16, 1
    %p48 = por %p46, %p47
    %p49 = scmp.ne.s32.totalorder %s38, %s39
    %p50 = scmp.eq.s32.totalorder %s16, 0
    %p51 = por %p49, %p50
    %p52 = scmp.ne.s32.totalorder %s38, %s39
    %p53 = scmp.eq.s32.totalorder %s17, 1
    %p54 = por %p52, %p53
    %p56 = scmp.ne.s32.totalorder %s39, %s55
    %p57 = scmp.eq.s32.totalorder %s17, 0
    %p58 = por %p56, %p57
    %s60 = sadd.s32 %s59, 1
    %p63 = scmp.eq.s32.totalorder %s11, 1
    %p64 = scmp.ne.s32.totalorder %s59, %s61
    %p65 = scmp.eq.s32.totalorder %s11, 0
    %p66 = por %p64, %p65
    %p67 = scmp.ne.s32.totalorder %s59, %s61
    %p68 = scmp.eq.s32.totalorder %s16, 1
    %p69 = por %p67, %p68
    %p70 = scmp.ne.s32.totalorder %s61, %s62
    %p71 = scmp.eq.s32.totalorder %s16, 0
    %p72 = por %p70, %p71
    %p73 = scmp.ne.s32.totalorder %s61, %s62
    %p74 = scmp.eq.s32.totalorder %s17, 1
    %p75 = por %p73, %p74
    %p77 = scmp.ne.s32.totalorder %s62, %s76
    %p78 = scmp.eq.s32.totalorder %s17, 0
    %p79 = por %p77, %p78
    %s81 = sadd.s32 %s80, 1
    %p84 = scmp.eq.s32.totalorder %s11, 1
    %p85 = scmp.ne.s32.totalorder %s80, %s82
    %p86 = scmp.eq.s32.totalorder %s11, 0
    %p87 = por %p85, %p86
    %p88 = scmp.ne.s32.totalorder %s80, %s82
    %p89 = scmp.eq.s32.totalorder %s16, 1
    %p90 = por %p88, %p89
    %p91 = scmp.ne.s32.totalorder %s82, %s83
    %p92 = scmp.eq.s32.totalorder %s16, 0
    %p93 = por %p91, %p92
    %p94 = scmp.ne.s32.totalorder %s82, %s83
    %p95 = scmp.eq.s32.totalorder %s17, 1
    %p96 = por %p94, %p95
    %p98 = scmp.ne.s32.totalorder %s83, %s97
    %p99 = scmp.eq.s32.totalorder %s17, 0
    %p100 = por %p98, %p99
    %s102 = sadd.s32 %s101, 1
    %p105 = scmp.eq.s32.totalorder %s11, 1
    %p106 = scmp.ne.s32.totalorder %s101, %s103
    %p107 = scmp.eq.s32.totalorder %s11, 0
    %p108 = por %p106, %p107
    %p109 = scmp.ne.s32.totalorder %s101, %s103
    %p110 = scmp.eq.s32.totalorder %s16, 1
    %p111 = por %p109, %p110
    %p112 = scmp.ne.s32.totalorder %s103, %s104
    %p113 = scmp.eq.s32.totalorder %s16, 0
    %p114 = por %p112, %p113
    %p115 = scmp.ne.s32.totalorder %s103, %s104
    %p116 = scmp.eq.s32.totalorder %s17, 1
    %p117 = por %p115, %p116
    %p119 = scmp.ne.s32.totalorder %s104, %s118
    %p120 = scmp.eq.s32.totalorder %s17, 0
    %p121 = por %p119, %p120
    %s123 = sadd.s32 %s122, 1
    %p126 = scmp.eq.s32.totalorder %s11, 1
    %p127 = scmp.ne.s32.totalorder %s122, %s124
    %p128 = scmp.eq.s32.totalorder %s11, 0
    %p129 = por %p127, %p128
    %p130 = scmp.ne.s32.totalorder %s122, %s124
    %p131 = scmp.eq.s32.totalorder %s16, 1
    %p132 = por %p130, %p131
    %p133 = scmp.ne.s32.totalorder %s124, %s125
    %p134 = scmp.eq.s32.totalorder %s16, 0
    %p135 = por %p133, %p134
    %p136 = scmp.ne.s32.totalorder %s124, %s125
    %p137 = scmp.eq.s32.totalorder %s17, 1
    %p138 = por %p136, %p137
    %p140 = scmp.ne.s32.totalorder %s125, %s139
    %p141 = scmp.eq.s32.totalorder %s17, 0
    %p142 = por %p140, %p141
    %s143 = ssub.s32 %s18, %s30
    %s144 = ssub.s32 %s19, %s26
    %s145 = sor.u32 %s143, %s144
    %p146 = scmp.eq.s32.totalorder %s145, 0
    %s148 = sadd.s32 %s147, 1
    %s149 = scalar_select %p146, %s147, %s148
    %p152 = pneg %p146
    %p153 = scmp.eq.s32.totalorder %s11, 1
    %p154 = por %p152, %p153
    %p155 = scmp.ne.s32.totalorder %s147, %s150
    %p156 = scmp.eq.s32.totalorder %s11, 0
    %p157 = por %p155, %p156
    %p158 = scmp.ne.s32.totalorder %s147, %s150
    %p159 = scmp.eq.s32.totalorder %s16, 1
    %p160 = por %p158, %p159
    %p161 = scmp.ne.s32.totalorder %s150, %s151
    %p162 = scmp.eq.s32.totalorder %s16, 0
    %p163 = por %p161, %p162
    %p164 = scmp.ne.s32.totalorder %s150, %s151
    %p165 = scmp.eq.s32.totalorder %s17, 1
    %p166 = por %p164, %p165
    %p168 = scmp.ne.s32.totalorder %s151, %s167
    %p169 = scmp.eq.s32.totalorder %s17, 0
    %p170 = por %p168, %p169
    %p171 = scmp.le.s32.totalorder 1, %s11
    %p172 = scmp.lt.s32.totalorder %s11, 3
    %p173 = pnand %p171, %p172
    %p174 = pneg %p173
    // Predicated region
    $region9: #{ensemble_forward.1} parent=5 // pred_check
      _
    $region10: #{ensemble_forward.1} parent=5 // pred_check_branch
      %176 = sbr.rel (%p173) target = $region12
    $region11: #{ensemble_forward.1} parent=5 // pred_region
      %s177 = ssub.s32 %s11, 1
      // Predicated region
      $region13: #{ensemble_forward.1} parent=11 // pred_check
        %p178 = pneg %p72
      $region14: #{ensemble_forward.1} parent=11 // pred_check_branch
        %180 = sbr.rel (%p178) target = $region16
      $region15: #{ensemble_forward.1} parent=11 // pred_region
        _
      $region16: #{ensemble_forward.1} parent=11 // pred_fallthru
        _
      // Predicated region
      $region17: #{ensemble_forward.1} parent=11 // pred_check
        %p181 = pneg %p93
      $region18: #{ensemble_forward.1} parent=11 // pred_check_branch
        %183 = sbr.rel (%p181) target = $region20
      $region19: #{ensemble_forward.1} parent=11 // pred_region
        _
      $region20: #{ensemble_forward.1} parent=11 // pred_fallthru
        _
      // Predicated region
      $region21: #{ensemble_forward.1} parent=11 // pred_check
        %p184 = pneg %p114
      $region22: #{ensemble_forward.1} parent=11 // pred_check_branch
        %186 = sbr.rel (%p184) target = $region24
      $region23: #{ensemble_forward.1} parent=11 // pred_region
        _
      $region24: #{ensemble_forward.1} parent=11 // pred_fallthru
        _
      // Predicated region
      $region25: #{ensemble_forward.1} parent=11 // pred_check
        %p187 = pneg %p135
      $region26: #{ensemble_forward.1} parent=11 // pred_check_branch
        %189 = sbr.rel (%p187) target = $region28
      $region27: #{ensemble_forward.1} parent=11 // pred_region
        _
      $region28: #{ensemble_forward.1} parent=11 // pred_fallthru
        _
    $region12: #{ensemble_forward.1} parent=5 // pred_fallthru
      _
    %p190 = scmp.lt.s32.totalorder %s11, 2
    // Predicated region
    $region29: #{ensemble_forward.1} parent=5 // pred_check
      %p191 = pneg %p190
    $region30: #{ensemble_forward.1} parent=5 // pred_check_branch
      %193 = sbr.rel (%p191) target = $region32
    $region31: #{ensemble_forward.1} parent=5 // pred_region
      // Predicated region
      $region33: #{ensemble_forward.1} parent=31 // pred_check
        %p194 = pneg %p45
      $region34: #{ensemble_forward.1} parent=31 // pred_check_branch
        %196 = sbr.rel (%p194) target = $region36
      $region35: #{ensemble_forward.1} parent=31 // pred_region
        %s197 = smul.u32 2, %s19
        %p198 = scmp.lt.s32.totalorder %s18, 1
        %s199 = scalar_select %p198, %s18, 1
        %p200 = scmp.lt.s32.totalorder %s197, 1
        %s201 = scalar_select %p200, %s197, 1
        %s202 = smul.addr %s199, 2
        %s203 = sadd.s32 %s201, %s202
        %s204 = smul.addr %s203, 4
        %s205 = scalar_lea.vmem %s0, %s204
        %s206 = smul.u32 2, %s19
      $region36: #{ensemble_forward.1} parent=31 // pred_fallthru
        _
    $region32: #{ensemble_forward.1} parent=5 // pred_fallthru
      _
    %p207 = scmp.le.s32.totalorder 1, %s11
    %p208 = scmp.lt.s32.totalorder %s11, 3
    %p209 = pnand %p207, %p208
    %p210 = pneg %p209
    // Predicated region
    $region37: #{ensemble_forward.1} parent=5 // pred_check
      _
    $region38: #{ensemble_forward.1} parent=5 // pred_check_branch
      %212 = sbr.rel (%p209) target = $region40
    $region39: #{ensemble_forward.1} parent=5 // pred_region
      %s213 = ssub.s32 %s11, 1
      %s214 = smul.u32 2, %s21
      %p215 = scmp.lt.s32.totalorder %s20, 1
      %s216 = scalar_select %p215, %s20, 1
      %p217 = scmp.lt.s32.totalorder %s214, 1
      %s218 = scalar_select %p217, %s214, 1
      %s219 = smul.addr %s216, 2
      %s220 = sadd.s32 %s218, %s219
      %s221 = smul.addr %s220, 4
      %s222 = scalar_lea.vmem %s0, %s221
      %p223 = pneg %p51
      %p224 = pneg %p48
      %p225 = pneg %p72
      %p226 = pneg %p69
      %p227 = pneg %p93
      %p228 = pneg %p90
      %p229 = pneg %p114
      %p230 = pneg %p111
      %p231 = pneg %p135
      %p232 = pneg %p132
      %p233 = pneg %p163
      %p234 = pneg %p160
      %p235 = scmp.lt.s32.totalorder %s20, 1
      %s236 = scalar_select %p235, %s20, 1
      %p237 = scmp.lt.s32.totalorder %s21, 0
      %s238 = scalar_select %p237, %s21, 0
      %s239 = sadd.s32 %s238, %s236
      %s240 = smul.addr %s239, 2
      %s241 = scalar_lea.vmem %s5, %s240
      %s242 = smul.u32 2, %s21
      %p243 = scmp.lt.s32.totalorder %s20, 1
      %s244 = scalar_select %p243, %s20, 1
      %p245 = scmp.lt.s32.totalorder %s242, 1
      %s246 = scalar_select %p245, %s242, 1
      %s247 = smul.addr %s244, 2
      %s248 = sadd.s32 %s246, %s247
      %s249 = smul.addr %s248, 4
      %s250 = scalar_lea.vmem %s0, %s249
      %s251 = smul.u32 2, %s21
      %p252 = scmp.lt.s32.totalorder %s20, 1
      %s253 = scalar_select %p252, %s20, 1
      %p254 = scmp.lt.s32.totalorder %s21, 0
      %s255 = scalar_select %p254, %s21, 0
      %s256 = sadd.s32 %s255, %s253
      %s257 = smul.addr %s256, 2
      %s258 = scalar_lea.vmem %s5, %s257
      %v260 = vld [vmem:[%s250] sm:$0x77]
      %v261 = vld [vmem:[%s1] sm:$0xff]
      %v262 = vld [vmem:[%s1 + $0x8] sm:$0xff]
      %v263 = vld [vmem:[%s1 + $0x10] sm:$0xff]
      %v264 = vld [vmem:[%s1 + $0x18] sm:$0xff]
      %v265 = vld [vmem:[%s1 + $0x20] sm:$0xff]
      %v266 = vld [vmem:[%s1 + $0x28] sm:$0xff]
      %v267 = vld [vmem:[%s1 + $0x30] sm:$0xff]
      %v268 = vld [vmem:[%s1 + $0x38] sm:$0xff]
      %v269 = vld [vmem:[%s1 + $0x40] sm:$0xff]
      %v270 = vld [vmem:[%s1 + $0x48] sm:$0xff]
      %v271 = vld [vmem:[%s1 + $0x50] sm:$0xff]
      %v272 = vld [vmem:[%s1 + $0x58] sm:$0xff]
      %v273 = vld [vmem:[%s1 + $0x60] sm:$0xff]
      %v274 = vld [vmem:[%s1 + $0x68] sm:$0xff]
      %v275 = vld [vmem:[%s2] sm:$0xff]
      %v276 = vld [vmem:[%s2 + $0x8] sm:$0xff]
      %v277 = vld [vmem:[%s2 + $0x10] sm:$0xff]
      %v278 = vld [vmem:[%s2 + $0x18] sm:$0xff]
      %v279 = vld [vmem:[%s2 + $0x20] sm:$0xff]
      %v280 = vld [vmem:[%s2 + $0x28] sm:$0xff]
      %v281 = vld [vmem:[%s2 + $0x30] sm:$0xff]
      %v282 = vld [vmem:[%s2 + $0x38] sm:$0xff]
      %v283 = vld [vmem:[%s2 + $0x40] sm:$0xff]
      %v284 = vld [vmem:[%s2 + $0x48] sm:$0xff]
      %v285 = vld [vmem:[%s2 + $0x50] sm:$0xff]
      %v286 = vld [vmem:[%s2 + $0x58] sm:$0xff]
      %v287 = vld [vmem:[%s2 + $0x60] sm:$0xff]
      %v288 = vld [vmem:[%s2 + $0x68] sm:$0xff]
      %290 = vset.pattern.permute.xlu0 0
      %291 = vperm.xlu0 %290, %v261
      %v292 = vpop.permute.xlu0 %291
      %295 = vset.pattern.permute.xlu0 0
      %296 = vperm.xlu0 %295, %v262
      %v297 = vpop.permute.xlu0 %296
      %300 = vset.pattern.permute.xlu0 0
      %301 = vperm.xlu0 %300, %v263
      %v302 = vpop.permute.xlu0 %301
      %305 = vset.pattern.permute.xlu0 0
      %306 = vperm.xlu0 %305, %v264
      %v307 = vpop.permute.xlu0 %306
      %310 = vset.pattern.permute.xlu0 0
      %311 = vperm.xlu0 %310, %v265
      %v312 = vpop.permute.xlu0 %311
      %315 = vset.pattern.permute.xlu0 0
      %316 = vperm.xlu0 %315, %v266
      %v317 = vpop.permute.xlu0 %316
      %320 = vset.pattern.permute.xlu0 0
      %321 = vperm.xlu0 %320, %v267
      %v322 = vpop.permute.xlu0 %321
      %325 = vset.pattern.permute.xlu0 0
      %326 = vperm.xlu0 %325, %v268
      %v327 = vpop.permute.xlu0 %326
      %330 = vset.pattern.permute.xlu0 0
      %331 = vperm.xlu0 %330, %v269
      %v332 = vpop.permute.xlu0 %331
      %335 = vset.pattern.permute.xlu0 0
      %336 = vperm.xlu0 %335, %v270
      %v337 = vpop.permute.xlu0 %336
      %340 = vset.pattern.permute.xlu0 0
      %341 = vperm.xlu0 %340, %v271
      %v342 = vpop.permute.xlu0 %341
      %345 = vset.pattern.permute.xlu0 0
      %346 = vperm.xlu0 %345, %v272
      %v347 = vpop.permute.xlu0 %346
      %350 = vset.pattern.permute.xlu0 0
      %351 = vperm.xlu0 %350, %v273
      %v352 = vpop.permute.xlu0 %351
      %355 = vset.pattern.permute.xlu0 0
      %356 = vperm.xlu0 %355, %v274
      %v357 = vpop.permute.xlu0 %356
      %v360 = vperm.slane %v260, 0
      %v361 = vperm.slane %v260, 4
      %v364 = vperm.slane %v360, 0
      %v365 = vperm.slane %v361, 0
      %v366 = vmul.f32 %v292, %v364
      %v367 = vmul.f32 %v292, %v365
      %v368 = vmul.f32 %v297, %v364
      %v369 = vmul.f32 %v297, %v365
      %v370 = vmul.f32 %v302, %v364
      %v371 = vmul.f32 %v302, %v365
      %v372 = vmul.f32 %v307, %v364
      %v373 = vmul.f32 %v307, %v365
      %v374 = vmul.f32 %v312, %v364
      %v375 = vmul.f32 %v312, %v365
      %v376 = vmul.f32 %v317, %v364
      %v377 = vmul.f32 %v317, %v365
      %v378 = vmul.f32 %v322, %v364
      %v379 = vmul.f32 %v322, %v365
      %v380 = vmul.f32 %v327, %v364
      %v381 = vmul.f32 %v327, %v365
      %v382 = vmul.f32 %v332, %v364
      %v383 = vmul.f32 %v332, %v365
      %v384 = vmul.f32 %v337, %v364
      %v385 = vmul.f32 %v337, %v365
      %v386 = vmul.f32 %v342, %v364
      %v387 = vmul.f32 %v342, %v365
      %v388 = vmul.f32 %v347, %v364
      %v389 = vmul.f32 %v347, %v365
      %v390 = vmul.f32 %v352, %v364
      %v391 = vmul.f32 %v352, %v365
      %v392 = vmul.f32 %v357, %v364
      %v393 = vmul.f32 %v357, %v365
      %395 = vset.pattern.permute.xlu0 0
      %396 = vperm.xlu0 %395, %v275
      %v397 = vpop.permute.xlu0 %396
      %400 = vset.pattern.permute.xlu0 0
      %401 = vperm.xlu0 %400, %v276
      %v402 = vpop.permute.xlu0 %401
      %405 = vset.pattern.permute.xlu0 0
      %406 = vperm.xlu0 %405, %v277
      %v407 = vpop.permute.xlu0 %406
      %410 = vset.pattern.permute.xlu0 0
      %411 = vperm.xlu0 %410, %v278
      %v412 = vpop.permute.xlu0 %411
      %415 = vset.pattern.permute.xlu0 0
      %416 = vperm.xlu0 %415, %v279
      %v417 = vpop.permute.xlu0 %416
      %420 = vset.pattern.permute.xlu0 0
      %421 = vperm.xlu0 %420, %v280
      %v422 = vpop.permute.xlu0 %421
      %425 = vset.pattern.permute.xlu0 0
      %426 = vperm.xlu0 %425, %v281
      %v427 = vpop.permute.xlu0 %426
      %430 = vset.pattern.permute.xlu0 0
      %431 = vperm.xlu0 %430, %v282
      %v432 = vpop.permute.xlu0 %431
      %435 = vset.pattern.permute.xlu0 0
      %436 = vperm.xlu0 %435, %v283
      %v437 = vpop.permute.xlu0 %436
      %440 = vset.pattern.permute.xlu0 0
      %441 = vperm.xlu0 %440, %v284
      %v442 = vpop.permute.xlu0 %441
      %445 = vset.pattern.permute.xlu0 0
      %446 = vperm.xlu0 %445, %v285
      %v447 = vpop.permute.xlu0 %446
      %450 = vset.pattern.permute.xlu0 0
      %451 = vperm.xlu0 %450, %v286
      %v452 = vpop.permute.xlu0 %451
      %455 = vset.pattern.permute.xlu0 0
      %456 = vperm.xlu0 %455, %v287
      %v457 = vpop.permute.xlu0 %456
      %460 = vset.pattern.permute.xlu0 0
      %461 = vperm.xlu0 %460, %v288
      %v462 = vpop.permute.xlu0 %461
      %v464 = vadd.f32 %v397, %v366
      %v465 = vadd.f32 %v397, %v367
      %v466 = vadd.f32 %v402, %v368
      %v467 = vadd.f32 %v402, %v369
      %v468 = vadd.f32 %v407, %v370
      %v469 = vadd.f32 %v407, %v371
      %v470 = vadd.f32 %v412, %v372
      %v471 = vadd.f32 %v412, %v373
      %v472 = vadd.f32 %v417, %v374
      %v473 = vadd.f32 %v417, %v375
      %v474 = vadd.f32 %v422, %v376
      %v475 = vadd.f32 %v422, %v377
      %v476 = vadd.f32 %v427, %v378
      %v477 = vadd.f32 %v427, %v379
      %v478 = vadd.f32 %v432, %v380
      %v479 = vadd.f32 %v432, %v381
      %v480 = vadd.f32 %v437, %v382
      %v481 = vadd.f32 %v437, %v383
      %v482 = vadd.f32 %v442, %v384
      %v483 = vadd.f32 %v442, %v385
      %v484 = vadd.f32 %v447, %v386
      %v485 = vadd.f32 %v447, %v387
      %v486 = vadd.f32 %v452, %v388
      %v487 = vadd.f32 %v452, %v389
      %v488 = vadd.f32 %v457, %v390
      %v489 = vadd.f32 %v457, %v391
      %v490 = vadd.f32 %v462, %v392
      %v491 = vadd.f32 %v462, %v393
      %492 = vset.pattern.permute.xlu0 1
      %493 = vperm.xlu0 %492, %v261
      %v494 = vpop.permute.xlu0 %493
      %496 = vset.pattern.permute.xlu0 1
      %497 = vperm.xlu0 %496, %v262
      %v498 = vpop.permute.xlu0 %497
      %500 = vset.pattern.permute.xlu0 1
      %501 = vperm.xlu0 %500, %v263
      %v502 = vpop.permute.xlu0 %501
      %504 = vset.pattern.permute.xlu0 1
      %505 = vperm.xlu0 %504, %v264
      %v506 = vpop.permute.xlu0 %505
      %508 = vset.pattern.permute.xlu0 1
      %509 = vperm.xlu0 %508, %v265
      %v510 = vpop.permute.xlu0 %509
      %512 = vset.pattern.permute.xlu0 1
      %513 = vperm.xlu0 %512, %v266
      %v514 = vpop.permute.xlu0 %513
      %516 = vset.pattern.permute.xlu0 1
      %517 = vperm.xlu0 %516, %v267
      %v518 = vpop.permute.xlu0 %517
      %520 = vset.pattern.permute.xlu0 1
      %521 = vperm.xlu0 %520, %v268
      %v522 = vpop.permute.xlu0 %521
      %524 = vset.pattern.permute.xlu0 1
      %525 = vperm.xlu0 %524, %v269
      %v526 = vpop.permute.xlu0 %525
      %528 = vset.pattern.permute.xlu0 1
      %529 = vperm.xlu0 %528, %v270
      %v530 = vpop.permute.xlu0 %529
      %532 = vset.pattern.permute.xlu0 1
      %533 = vperm.xlu0 %532, %v271
      %v534 = vpop.permute.xlu0 %533
      %536 = vset.pattern.permute.xlu0 1
      %537 = vperm.xlu0 %536, %v272
      %v538 = vpop.permute.xlu0 %537
      %540 = vset.pattern.permute.xlu0 1
      %541 = vperm.xlu0 %540, %v273
      %v542 = vpop.permute.xlu0 %541
      %544 = vset.pattern.permute.xlu0 1
      %545 = vperm.xlu0 %544, %v274
      %v546 = vpop.permute.xlu0 %545
      %v548 = vperm.slane %v260, 1
      %v549 = vperm.slane %v260, 5
      %v552 = vperm.slane %v548, 1
      %v553 = vperm.slane %v549, 1
      %v554 = vmul.f32 %v494, %v552
      %v555 = vmul.f32 %v494, %v553
      %v556 = vmul.f32 %v498, %v552
      %v557 = vmul.f32 %v498, %v553
      %v558 = vmul.f32 %v502, %v552
      %v559 = vmul.f32 %v502, %v553
      %v560 = vmul.f32 %v506, %v552
      %v561 = vmul.f32 %v506, %v553
      %v562 = vmul.f32 %v510, %v552
      %v563 = vmul.f32 %v510, %v553
      %v564 = vmul.f32 %v514, %v552
      %v565 = vmul.f32 %v514, %v553
      %v566 = vmul.f32 %v518, %v552
      %v567 = vmul.f32 %v518, %v553
      %v568 = vmul.f32 %v522, %v552
      %v569 = vmul.f32 %v522, %v553
      %v570 = vmul.f32 %v526, %v552
      %v571 = vmul.f32 %v526, %v553
      %v572 = vmul.f32 %v530, %v552
      %v573 = vmul.f32 %v530, %v553
      %v574 = vmul.f32 %v534, %v552
      %v575 = vmul.f32 %v534, %v553
      %v576 = vmul.f32 %v538, %v552
      %v577 = vmul.f32 %v538, %v553
      %v578 = vmul.f32 %v542, %v552
      %v579 = vmul.f32 %v542, %v553
      %v580 = vmul.f32 %v546, %v552
      %v581 = vmul.f32 %v546, %v553
      %v582 = vadd.f32 %v464, %v554
      %v583 = vadd.f32 %v465, %v555
      %v584 = vadd.f32 %v466, %v556
      %v585 = vadd.f32 %v467, %v557
      %v586 = vadd.f32 %v468, %v558
      %v587 = vadd.f32 %v469, %v559
      %v588 = vadd.f32 %v470, %v560
      %v589 = vadd.f32 %v471, %v561
      %v590 = vadd.f32 %v472, %v562
      %v591 = vadd.f32 %v473, %v563
      %v592 = vadd.f32 %v474, %v564
      %v593 = vadd.f32 %v475, %v565
      %v594 = vadd.f32 %v476, %v566
      %v595 = vadd.f32 %v477, %v567
      %v596 = vadd.f32 %v478, %v568
      %v597 = vadd.f32 %v479, %v569
      %v598 = vadd.f32 %v480, %v570
      %v599 = vadd.f32 %v481, %v571
      %v600 = vadd.f32 %v482, %v572
      %v601 = vadd.f32 %v483, %v573
      %v602 = vadd.f32 %v484, %v574
      %v603 = vadd.f32 %v485, %v575
      %v604 = vadd.f32 %v486, %v576
      %v605 = vadd.f32 %v487, %v577
      %v606 = vadd.f32 %v488, %v578
      %v607 = vadd.f32 %v489, %v579
      %v608 = vadd.f32 %v490, %v580
      %v609 = vadd.f32 %v491, %v581
      %610 = vset.pattern.permute.xlu0 2
      %611 = vperm.xlu0 %610, %v261
      %v612 = vpop.permute.xlu0 %611
      %614 = vset.pattern.permute.xlu0 2
      %615 = vperm.xlu0 %614, %v262
      %v616 = vpop.permute.xlu0 %615
      %618 = vset.pattern.permute.xlu0 2
      %619 = vperm.xlu0 %618, %v263
      %v620 = vpop.permute.xlu0 %619
      %622 = vset.pattern.permute.xlu0 2
      %623 = vperm.xlu0 %622, %v264
      %v624 = vpop.permute.xlu0 %623
      %626 = vset.pattern.permute.xlu0 2
      %627 = vperm.xlu0 %626, %v265
      %v628 = vpop.permute.xlu0 %627
      %630 = vset.pattern.permute.xlu0 2
      %631 = vperm.xlu0 %630, %v266
      %v632 = vpop.permute.xlu0 %631
      %634 = vset.pattern.permute.xlu0 2
      %635 = vperm.xlu0 %634, %v267
      %v636 = vpop.permute.xlu0 %635
      %638 = vset.pattern.permute.xlu0 2
      %639 = vperm.xlu0 %638, %v268
      %v640 = vpop.permute.xlu0 %639
      %642 = vset.pattern.permute.xlu0 2
      %643 = vperm.xlu0 %642, %v269
      %v644 = vpop.permute.xlu0 %643
      %646 = vset.pattern.permute.xlu0 2
      %647 = vperm.xlu0 %646, %v270
      %v648 = vpop.permute.xlu0 %647
      %650 = vset.pattern.permute.xlu0 2
      %651 = vperm.xlu0 %650, %v271
      %v652 = vpop.permute.xlu0 %651
      %654 = vset.pattern.permute.xlu0 2
      %655 = vperm.xlu0 %654, %v272
      %v656 = vpop.permute.xlu0 %655
      %658 = vset.pattern.permute.xlu0 2
      %659 = vperm.xlu0 %658, %v273
      %v660 = vpop.permute.xlu0 %659
      %662 = vset.pattern.permute.xlu0 2
      %663 = vperm.xlu0 %662, %v274
      %v664 = vpop.permute.xlu0 %663
      %v666 = vperm.slane %v260, 2
      %v667 = vperm.slane %v260, 6
      %v670 = vperm.slane %v666, 2
      %v671 = vperm.slane %v667, 2
      %v672 = vmul.f32 %v612, %v670
      %v673 = vmul.f32 %v612, %v671
      %v674 = vmul.f32 %v616, %v670
      %v675 = vmul.f32 %v616, %v671
      %v676 = vmul.f32 %v620, %v670
      %v677 = vmul.f32 %v620, %v671
      %v678 = vmul.f32 %v624, %v670
      %v679 = vmul.f32 %v624, %v671
      %v680 = vmul.f32 %v628, %v670
      %v681 = vmul.f32 %v628, %v671
      %v682 = vmul.f32 %v632, %v670
      %v683 = vmul.f32 %v632, %v671
      %v684 = vmul.f32 %v636, %v670
      %v685 = vmul.f32 %v636, %v671
      %v686 = vmul.f32 %v640, %v670
      %v687 = vmul.f32 %v640, %v671
      %v688 = vmul.f32 %v644, %v670
      %v689 = vmul.f32 %v644, %v671
      %v690 = vmul.f32 %v648, %v670
      %v691 = vmul.f32 %v648, %v671
      %v692 = vmul.f32 %v652, %v670
      %v693 = vmul.f32 %v652, %v671
      %v694 = vmul.f32 %v656, %v670
      %v695 = vmul.f32 %v656, %v671
      %v696 = vmul.f32 %v660, %v670
      %v697 = vmul.f32 %v660, %v671
      %v698 = vmul.f32 %v664, %v670
      %v699 = vmul.f32 %v664, %v671
      %v700 = vadd.f32 %v582, %v672
      %v701 = vadd.f32 %v583, %v673
      %v702 = vadd.f32 %v584, %v674
      %v703 = vadd.f32 %v585, %v675
      %v704 = vadd.f32 %v586, %v676
      %v705 = vadd.f32 %v587, %v677
      %v706 = vadd.f32 %v588, %v678
      %v707 = vadd.f32 %v589, %v679
      %v708 = vadd.f32 %v590, %v680
      %v709 = vadd.f32 %v591, %v681
      %v710 = vadd.f32 %v592, %v682
      %v711 = vadd.f32 %v593, %v683
      %v712 = vadd.f32 %v594, %v684
      %v713 = vadd.f32 %v595, %v685
      %v714 = vadd.f32 %v596, %v686
      %v715 = vadd.f32 %v597, %v687
      %v716 = vadd.f32 %v598, %v688
      %v717 = vadd.f32 %v599, %v689
      %v718 = vadd.f32 %v600, %v690
      %v719 = vadd.f32 %v601, %v691
      %v720 = vadd.f32 %v602, %v692
      %v721 = vadd.f32 %v603, %v693
      %v722 = vadd.f32 %v604, %v694
      %v723 = vadd.f32 %v605, %v695
      %v724 = vadd.f32 %v606, %v696
      %v725 = vadd.f32 %v607, %v697
      %v726 = vadd.f32 %v608, %v698
      %v727 = vadd.f32 %v609, %v699
      %v728 = vmax.f32 %v700, 0.0
      %v729 = vmax.f32 %v701, 0.0
      %v730 = vmax.f32 %v702, 0.0
      %v731 = vmax.f32 %v703, 0.0
      %v732 = vmax.f32 %v704, 0.0
      %v733 = vmax.f32 %v705, 0.0
      %v734 = vmax.f32 %v706, 0.0
      %v735 = vmax.f32 %v707, 0.0
      %v736 = vmax.f32 %v708, 0.0
      %v737 = vmax.f32 %v709, 0.0
      %v738 = vmax.f32 %v710, 0.0
      %v739 = vmax.f32 %v711, 0.0
      %v740 = vmax.f32 %v712, 0.0
      %v741 = vmax.f32 %v713, 0.0
      %v742 = vmax.f32 %v714, 0.0
      %v743 = vmax.f32 %v715, 0.0
      %v744 = vmax.f32 %v716, 0.0
      %v745 = vmax.f32 %v717, 0.0
      %v746 = vmax.f32 %v718, 0.0
      %v747 = vmax.f32 %v719, 0.0
      %v748 = vmax.f32 %v720, 0.0
      %v749 = vmax.f32 %v721, 0.0
      %v750 = vmax.f32 %v722, 0.0
      %v751 = vmax.f32 %v723, 0.0
      %v752 = vmax.f32 %v724, 0.0
      %v753 = vmax.f32 %v725, 0.0
      %v754 = vmax.f32 %v726, 0.0
      %v755 = vmax.f32 %v727, 0.0
      %v756 = vpack.c.bf16 %v730, %v728
      %v757 = vpack.c.bf16 %v731, %v729
      %v758 = vpack.c.bf16 %v734, %v732
      %v759 = vpack.c.bf16 %v735, %v733
      %v760 = vpack.c.bf16 %v738, %v736
      %v761 = vpack.c.bf16 %v739, %v737
      %v762 = vpack.c.bf16 %v742, %v740
      %v763 = vpack.c.bf16 %v743, %v741
      %v764 = vpack.c.bf16 %v746, %v744
      %v765 = vpack.c.bf16 %v747, %v745
      %v766 = vpack.c.bf16 %v750, %v748
      %v767 = vpack.c.bf16 %v751, %v749
      %v768 = vpack.c.bf16 %v754, %v752
      %v769 = vpack.c.bf16 %v755, %v753
      %v770 = vld [vmem:[%s3] sm:$0xf]
      %v771 = vld [vmem:[%s3 + $0x4] sm:$0xf]
      %v772 = vld [vmem:[%s3 + $0x8] sm:$0xf]
      %v773 = vld [vmem:[%s3 + $0xc] sm:$0xf]
      %v774 = vld [vmem:[%s3 + $0x10] sm:$0xf]
      %v775 = vld [vmem:[%s3 + $0x14] sm:$0xf]
      %v776 = vld [vmem:[%s3 + $0x18] sm:$0xf]
      %v777 = vld [vmem:[%s3 + $0x1c] sm:$0xf]
      %v778 = vld [vmem:[%s3 + $0x20] sm:$0xf]
      %v779 = vld [vmem:[%s4] sm:$0xff]
      %v780 = vld [vmem:[%s4 + $0x8] sm:$0xff]
      %v781 = vld [vmem:[%s4 + $0x10] sm:$0xff]
      %v782 = vld [vmem:[%s4 + $0x18] sm:$0xff]
      %v783 = vld [vmem:[%s4 + $0x20] sm:$0xff]
      %v784 = vld [vmem:[%s4 + $0x28] sm:$0xff]
      %v785 = vld [vmem:[%s4 + $0x30] sm:$0xff]
      %v786 = vld [vmem:[%s4 + $0x38] sm:$0xff]
      %v787 = vld [vmem:[%s4 + $0x40] sm:$0xff]
      %789 = vset.pattern.permute.xlu0 0
      %790 = vperm.xlu0 %789, %v779
      %v791 = vpop.permute.xlu0 %790
      %794 = vset.pattern.permute.xlu0 0
      %795 = vperm.xlu0 %794, %v780
      %v796 = vpop.permute.xlu0 %795
      %799 = vset.pattern.permute.xlu0 0
      %800 = vperm.xlu0 %799, %v781
      %v801 = vpop.permute.xlu0 %800
      %804 = vset.pattern.permute.xlu0 0
      %805 = vperm.xlu0 %804, %v782
      %v806 = vpop.permute.xlu0 %805
      %809 = vset.pattern.permute.xlu0 0
      %810 = vperm.xlu0 %809, %v783
      %v811 = vpop.permute.xlu0 %810
      %814 = vset.pattern.permute.xlu0 0
      %815 = vperm.xlu0 %814, %v784
      %v816 = vpop.permute.xlu0 %815
      %819 = vset.pattern.permute.xlu0 0
      %820 = vperm.xlu0 %819, %v785
      %v821 = vpop.permute.xlu0 %820
      %824 = vset.pattern.permute.xlu0 0
      %825 = vperm.xlu0 %824, %v786
      %v826 = vpop.permute.xlu0 %825
      %829 = vset.pattern.permute.xlu0 0
      %830 = vperm.xlu0 %829, %v787
      %v831 = vpop.permute.xlu0 %830
      %v842 = vunpack.c.l.b16 %v770
      %v843 = vunpack.c.l.b16 %v771
      %v844 = vunpack.c.l.b16 %v772
      %v845 = vunpack.c.l.b16 %v773
      %v846 = vunpack.c.l.b16 %v774
      %v847 = vunpack.c.l.b16 %v775
      %v848 = vunpack.c.l.b16 %v776
      %v849 = vunpack.c.l.b16 %v777
      %v850 = vunpack.c.l.b16 %v778
      %v851 = vpack.c.b16 %v843, %v842
      %v852 = vpack.c.b16 %v845, %v844
      %v853 = vpack.c.b16 %v847, %v846
      %v854 = vpack.c.b16 %v849, %v848
      %v855 = vpack.c.b16 %v850, %v850
      %vm856 = vcmask 916480
      %v858 = vsel %vm856, %v851, 0
      %v861 = vsel %vm856, %v852, 0
      %v864 = vsel %vm856, %v853, 0
      %v867 = vsel %vm856, %v854, 0
      %v870 = vsel %vm856, %v855, 0
      %872 = vmatpush.bf16.msra.mxu0 0
      %873 = vmatpush.bf16.msra.mxu0 %v768
      %874 = vmatpush.bf16.msra.mxu0 %v766
      %875 = vmatpush.bf16.msra.mxu0 %v764
      %876 = vmatpush.bf16.msra.mxu0 %v762
      %877 = vmatpush.bf16.msra.mxu0 %v760
      %878 = vmatpush.bf16.msra.mxu0 %v758
      %879 = vmatpush.bf16.msra.mxu0 %v756
      %880 = vmatmul.bf16.gmra.mxu0 %v858
      %v881 = vpop.f32.mrf.mxu0
      %v882 = vadd.f32 %v791, %v881
      %v883 = vpop.f32.mrf.mxu0
      %v884 = vadd.f32 %v796, %v883
      %885 = vmatmul.bf16.gmra.mxu0 %v861
      %v886 = vpop.f32.mrf.mxu0
      %v887 = vadd.f32 %v801, %v886
      %v888 = vpop.f32.mrf.mxu0
      %v889 = vadd.f32 %v806, %v888
      %890 = vmatmul.bf16.gmra.mxu0 %v864
      %v891 = vpop.f32.mrf.mxu0
      %v892 = vadd.f32 %v811, %v891
      %v893 = vpop.f32.mrf.mxu0
      %v894 = vadd.f32 %v816, %v893
      %895 = vmatmul.bf16.gmra.mxu0 %v867
      %v896 = vpop.f32.mrf.mxu0
      %v897 = vadd.f32 %v821, %v896
      %v898 = vpop.f32.mrf.mxu0
      %v899 = vadd.f32 %v826, %v898
      %900 = vmatmul.bf16.gmra.mxu0 %v870
      %v901 = vpop.f32.mrf.mxu0
      %v902 = vadd.f32 %v831, %v901
      %v903 = vpop.f32.mrf.mxu0
      %904 = vdwg.mxu0
      %905 = vmatpush.bf16.msra.mxu0 0
      %906 = vmatpush.bf16.msra.mxu0 %v769
      %907 = vmatpush.bf16.msra.mxu0 %v767
      %908 = vmatpush.bf16.msra.mxu0 %v765
      %909 = vmatpush.bf16.msra.mxu0 %v763
      %910 = vmatpush.bf16.msra.mxu0 %v761
      %911 = vmatpush.bf16.msra.mxu0 %v759
      %912 = vmatpush.bf16.msra.mxu0 %v757
      %913 = vmatmul.bf16.gmra.mxu0 %v858
      %v914 = vpop.f32.mrf.mxu0
      %v915 = vadd.f32 %v791, %v914
      %v916 = vpop.f32.mrf.mxu0
      %v917 = vadd.f32 %v796, %v916
      %918 = vmatmul.bf16.gmra.mxu0 %v861
      %v919 = vpop.f32.mrf.mxu0
      %v920 = vadd.f32 %v801, %v919
      %v921 = vpop.f32.mrf.mxu0
      %v922 = vadd.f32 %v806, %v921
      %923 = vmatmul.bf16.gmra.mxu0 %v864
      %v924 = vpop.f32.mrf.mxu0
      %v925 = vadd.f32 %v811, %v924
      %v926 = vpop.f32.mrf.mxu0
      %v927 = vadd.f32 %v816, %v926
      %928 = vmatmul.bf16.gmra.mxu0 %v867
      %v929 = vpop.f32.mrf.mxu0
      %v930 = vadd.f32 %v821, %v929
      %v931 = vpop.f32.mrf.mxu0
      %v932 = vadd.f32 %v826, %v931
      %933 = vmatmul.bf16.gmra.mxu0 %v870
      %v934 = vpop.f32.mrf.mxu0
      %v935 = vadd.f32 %v831, %v934
      %v936 = vpop.f32.mrf.mxu0
      %937 = vdwg.mxu0
      %v938 = vlaneseq
      %v939 = vshrl.u32 %v938, 7
      %v940 = vadd.s32 %v939, 8
      %v941 = vadd.s32 %v939, 16
      %v942 = vmax.f32 %v882, %v887
      %v943 = vmax.f32 %v942, %v884
      %v944 = vrot.slane %v943, 4
      %v945 = vmax.f32 %v943, %v944
      %v946 = vrot.slane %v945, 2
      %v947 = vmax.f32 %v945, %v946
      %v948 = vrot.slane %v947, 1
      %v949 = vmax.f32 %v947, %v948
      %v950 = vmax.f32 %v915, %v920
      %v951 = vmax.f32 %v950, %v917
      %v952 = vrot.slane %v951, 4
      %v953 = vmax.f32 %v951, %v952
      %v954 = vrot.slane %v953, 2
      %v955 = vmax.f32 %v953, %v954
      %v956 = vrot.slane %v955, 1
      %v957 = vmax.f32 %v955, %v956
      %vm958 = vcmp.eq.f32.partialorder %v882, %v949
      %vm959 = vcmp.eq.f32.partialorder %v915, %v957
      %vm960 = vcmp.eq.f32.partialorder %v884, %v949
      %vm961 = vcmp.eq.f32.partialorder %v917, %v957
      %vm962 = vcmp.eq.f32.partialorder %v887, %v949
      %vm963 = vcmp.eq.f32.partialorder %v920, %v957
      %v964 = vsel %vm958, %v939, 24
      %v965 = vsel %vm959, %v939, 24
      %v966 = vsel %vm960, %v940, 24
      %v967 = vsel %vm961, %v940, 24
      %v968 = vsel %vm962, %v941, 24
      %v969 = vsel %vm963, %v941, 24
      %vm970 = vcmp.lt.s32.totalorder %v964, %v968
      %v971 = vsel %vm970, %v964, %v968
      %vm972 = vcmp.lt.s32.totalorder %v971, %v966
      %v973 = vsel %vm972, %v971, %v966
      %v974 = vrot.slane %v973, 4
      %vm975 = vcmp.lt.s32.totalorder %v973, %v974
      %v976 = vsel %vm975, %v973, %v974
      %v977 = vrot.slane %v976, 2
      %vm978 = vcmp.lt.s32.totalorder %v976, %v977
      %v979 = vsel %vm978, %v976, %v977
      %v980 = vrot.slane %v979, 1
      %vm981 = vcmp.lt.s32.totalorder %v979, %v980
      %v982 = vsel %vm981, %v979, %v980
      %vm983 = vcmp.lt.s32.totalorder %v965, %v969
      %v984 = vsel %vm983, %v965, %v969
      %vm985 = vcmp.lt.s32.totalorder %v984, %v967
      %v986 = vsel %vm985, %v984, %v967
      %v987 = vrot.slane %v986, 4
      %vm988 = vcmp.lt.s32.totalorder %v986, %v987
      %v989 = vsel %vm988, %v986, %v987
      %v990 = vrot.slane %v989, 2
      %vm991 = vcmp.lt.s32.totalorder %v989, %v990
      %v992 = vsel %vm991, %v989, %v990
      %v993 = vrot.slane %v992, 1
      %vm994 = vcmp.lt.s32.totalorder %v992, %v993
      %v995 = vsel %vm994, %v992, %v993
      %v996 = vmax.f32 %v889, %v894
      %v997 = vmax.f32 %v996, %v892
      %v998 = vrot.slane %v997, 4
      %v999 = vmax.f32 %v997, %v998
      %v1000 = vrot.slane %v999, 2
      %v1001 = vmax.f32 %v999, %v1000
      %v1002 = vrot.slane %v1001, 1
      %v1003 = vmax.f32 %v1001, %v1002
      %v1004 = vmax.f32 %v922, %v927
      %v1005 = vmax.f32 %v1004, %v925
      %v1006 = vrot.slane %v1005, 4
      %v1007 = vmax.f32 %v1005, %v1006
      %v1008 = vrot.slane %v1007, 2
      %v1009 = vmax.f32 %v1007, %v1008
      %v1010 = vrot.slane %v1009, 1
      %v1011 = vmax.f32 %v1009, %v1010
      %vm1012 = vcmp.eq.f32.partialorder %v889, %v1003
      %vm1013 = vcmp.eq.f32.partialorder %v922, %v1011
      %vm1014 = vcmp.eq.f32.partialorder %v892, %v1003
      %vm1015 = vcmp.eq.f32.partialorder %v925, %v1011
      %vm1016 = vcmp.eq.f32.partialorder %v894, %v1003
      %vm1017 = vcmp.eq.f32.partialorder %v927, %v1011
      %v1018 = vsel %vm1012, %v939, 24
      %v1019 = vsel %vm1013, %v939, 24
      %v1020 = vsel %vm1014, %v940, 24
      %v1021 = vsel %vm1015, %v940, 24
      %v1022 = vsel %vm1016, %v941, 24
      %v1023 = vsel %vm1017, %v941, 24
      %vm1024 = vcmp.lt.s32.totalorder %v1018, %v1022
      %v1025 = vsel %vm1024, %v1018, %v1022
      %vm1026 = vcmp.lt.s32.totalorder %v1025, %v1020
      %v1027 = vsel %vm1026, %v1025, %v1020
      %v1028 = vrot.slane %v1027, 4
      %vm1029 = vcmp.lt.s32.totalorder %v1027, %v1028
      %v1030 = vsel %vm1029, %v1027, %v1028
      %v1031 = vrot.slane %v1030, 2
      %vm1032 = vcmp.lt.s32.totalorder %v1030, %v1031
      %v1033 = vsel %vm1032, %v1030, %v1031
      %v1034 = vrot.slane %v1033, 1
      %vm1035 = vcmp.lt.s32.totalorder %v1033, %v1034
      %v1036 = vsel %vm1035, %v1033, %v1034
      %vm1037 = vcmp.lt.s32.totalorder %v1019, %v1023
      %v1038 = vsel %vm1037, %v1019, %v1023
      %vm1039 = vcmp.lt.s32.totalorder %v1038, %v1021
      %v1040 = vsel %vm1039, %v1038, %v1021
      %v1041 = vrot.slane %v1040, 4
      %vm1042 = vcmp.lt.s32.totalorder %v1040, %v1041
      %v1043 = vsel %vm1042, %v1040, %v1041
      %v1044 = vrot.slane %v1043, 2
      %vm1045 = vcmp.lt.s32.totalorder %v1043, %v1044
      %v1046 = vsel %vm1045, %v1043, %v1044
      %v1047 = vrot.slane %v1046, 1
      %vm1048 = vcmp.lt.s32.totalorder %v1046, %v1047
      %v1049 = vsel %vm1048, %v1046, %v1047
      %v1050 = vmax.f32 %v897, %v902
      %v1051 = vmax.f32 %v1050, %v899
      %v1052 = vrot.slane %v1051, 4
      %v1053 = vmax.f32 %v1051, %v1052
      %v1054 = vrot.slane %v1053, 2
      %v1055 = vmax.f32 %v1053, %v1054
      %v1056 = vrot.slane %v1055, 1
      %v1057 = vmax.f32 %v1055, %v1056
      %v1058 = vmax.f32 %v930, %v935
      %v1059 = vmax.f32 %v1058, %v932
      %v1060 = vrot.slane %v1059, 4
      %v1061 = vmax.f32 %v1059, %v1060
      %v1062 = vrot.slane %v1061, 2
      %v1063 = vmax.f32 %v1061, %v1062
      %v1064 = vrot.slane %v1063, 1
      %v1065 = vmax.f32 %v1063, %v1064
      %vm1066 = vcmp.eq.f32.partialorder %v897, %v1057
      %vm1067 = vcmp.eq.f32.partialorder %v930, %v1065
      %vm1068 = vcmp.eq.f32.partialorder %v899, %v1057
      %vm1069 = vcmp.eq.f32.partialorder %v932, %v1065
      %vm1070 = vcmp.eq.f32.partialorder %v902, %v1057
      %vm1071 = vcmp.eq.f32.partialorder %v935, %v1065
      %v1072 = vsel %vm1066, %v939, 24
      %v1073 = vsel %vm1067, %v939, 24
      %v1074 = vsel %vm1068, %v940, 24
      %v1075 = vsel %vm1069, %v940, 24
      %v1076 = vsel %vm1070, %v941, 24
      %v1077 = vsel %vm1071, %v941, 24
      %vm1078 = vcmp.lt.s32.totalorder %v1072, %v1076
      %v1079 = vsel %vm1078, %v1072, %v1076
      %vm1080 = vcmp.lt.s32.totalorder %v1079, %v1074
      %v1081 = vsel %vm1080, %v1079, %v1074
      %v1082 = vrot.slane %v1081, 4
      %vm1083 = vcmp.lt.s32.totalorder %v1081, %v1082
      %v1084 = vsel %vm1083, %v1081, %v1082
      %v1085 = vrot.slane %v1084, 2
      %vm1086 = vcmp.lt.s32.totalorder %v1084, %v1085
      %v1087 = vsel %vm1086, %v1084, %v1085
      %v1088 = vrot.slane %v1087, 1
      %vm1089 = vcmp.lt.s32.totalorder %v1087, %v1088
      %v1090 = vsel %vm1089, %v1087, %v1088
      %vm1091 = vcmp.lt.s32.totalorder %v1073, %v1077
      %v1092 = vsel %vm1091, %v1073, %v1077
      %vm1093 = vcmp.lt.s32.totalorder %v1092, %v1075
      %v1094 = vsel %vm1093, %v1092, %v1075
      %v1095 = vrot.slane %v1094, 4
      %vm1096 = vcmp.lt.s32.totalorder %v1094, %v1095
      %v1097 = vsel %vm1096, %v1094, %v1095
      %v1098 = vrot.slane %v1097, 2
      %vm1099 = vcmp.lt.s32.totalorder %v1097, %v1098
      %v1100 = vsel %vm1099, %v1097, %v1098
      %v1101 = vrot.slane %v1100, 1
      %vm1102 = vcmp.lt.s32.totalorder %v1100, %v1101
      %v1103 = vsel %vm1102, %v1100, %v1101
      %vm1104 = vcmp.ne.s32.totalorder %v1036, 0
      %vm1105 = vcmp.ne.s32.totalorder %v1049, 0
      %v1106 = vsel %vm1104, %v1036, %v1090
      %v1107 = vsel %vm1105, %v1049, %v1103
      %vm1108 = vcmp.ne.s32.totalorder %v982, 0
      %vm1109 = vcmp.ne.s32.totalorder %v995, 0
      %v1110 = vsel %vm1108, %v982, %v1106
      %v1111 = vsel %vm1109, %v995, %v1107
      %vm1112 = vcmask 1040384
      %v1113 = vsel %vm1112, %v1110, %v1111
      %1114 = vst [vmem:[%s258] sm:$0x3] %v1113
      %p1115 = scmp.lt.s32.totalorder %s20, 1
      %s1116 = scalar_select %p1115, %s20, 1
      %p1117 = scmp.lt.s32.totalorder %s21, 0
      %s1118 = scalar_select %p1117, %s21, 0
      %s1119 = sadd.s32 %s1118, %s1116
      %s1120 = smul.addr %s1119, 2
      %s1121 = scalar_lea.vmem %s5, %s1120
      // Predicated region
      $region41: #{ensemble_forward.1} parent=39 // pred_check
        %p1122 = pneg %p160
      $region42: #{ensemble_forward.1} parent=39 // pred_check_branch
        %1124 = sbr.rel (%p1122) target = $region44
      $region43: #{ensemble_forward.1} parent=39 // pred_region
        _
      $region44: #{ensemble_forward.1} parent=39 // pred_fallthru
        _
    $region40: #{ensemble_forward.1} parent=5 // pred_fallthru
      _
    %p1125 = scmp.le.s32.totalorder 2, %s11
    // Predicated region
    $region45: #{ensemble_forward.1} parent=5 // pred_check
      %p1126 = pneg %p1125
    $region46: #{ensemble_forward.1} parent=5 // pred_check_branch
      %1128 = sbr.rel (%p1126) target = $region48
    $region47: #{ensemble_forward.1} parent=5 // pred_region
      %s1129 = ssub.s32 %s11, 2
      // Predicated region
      $region49: #{ensemble_forward.1} parent=47 // pred_check
        %p1130 = pneg %p166
      $region50: #{ensemble_forward.1} parent=47 // pred_check_branch
        %1132 = sbr.rel (%p1130) target = $region52
      $region51: #{ensemble_forward.1} parent=47 // pred_region
        %p1133 = scmp.lt.s32.totalorder %s22, 1
        %s1134 = scalar_select %p1133, %s22, 1
        %p1135 = scmp.lt.s32.totalorder %s23, 0
        %s1136 = scalar_select %p1135, %s23, 0
        %s1137 = sadd.s32 %s1136, %s1134
        %s1138 = smul.addr %s1137, 2
        %s1139 = scalar_lea.vmem %s5, %s1138
      $region52: #{ensemble_forward.1} parent=47 // pred_fallthru
        _
    $region48: #{ensemble_forward.1} parent=5 // pred_fallthru
      _
  $region6: #{ensemble_forward.1} parent=0 // loop_footer
    %s15 = sadd.s32 1, %s11
  $region7: #{ensemble_forward.1} parent=0 // loop_footer_branch
    %10 = sbr.rel target = $region3
  $region8: #{ensemble_forward.1} parent=0 // loop_exit
    _

</llo_original>
